<compile_context>
chip_gen: v7x
topology: tpu7x:2x2x1
jax: 0.10.0
libtpu: 0.0.40
codegen_flags: <defaults>
</compile_context>

<pallas_src>
import functools
import math
import warnings

import jax
import jax.numpy as jnp
import numpy as np
from jax import lax
from jax.experimental import pallas as pl
from jax.experimental.pallas import tpu as pltpu

# --- 3-term Cody-Waite split of 2*pi (q * _P1 is exact for q < 2**16) -------
_TWO_PI = 2.0 * math.pi
_P1 = 6.28125                                   # 2*pi truncated to 8 mantissa bits
_P2 = float(np.float32(_TWO_PI - _P1))
_P3 = float(np.float32(_TWO_PI - _P1 - _P2))
_INV_2PI = float(np.float32(1.0 / _TWO_PI))


def _theta_f32(dim: int) -> np.ndarray:
    """Inverse frequencies, bit-identical to the PyTorch / numpy reference."""
    return (1.0 / (10000.0 ** (np.arange(0, dim, 2, dtype=np.float32) / dim))
            ).astype(np.float32)


def _rotary_slab_kernel(const_ref, o_ref, *, k, tile_rows, chunk_rows):
    """Writes one (tile_rows, k*dim) tile of the interleaved cos/sin slab.

    Row-major slab layout == torch.stack([cos, sin], -1).half() layout:
      slab[r, p*dim + 2*j + 0] = cos(i * theta_j)
      slab[r, p*dim + 2*j + 1] = sin(i * theta_j),   with i = r*k + p
    sin is cos(arg - pi/2) applied to the mod-2*pi *reduced* argument, so every
    element costs one EUP cos and large phases keep f32-level accuracy.
    """
    theta = const_ref[0:1, :]   # (1, w) f32: theta_j per lane (reference bits)
    pos = const_ref[1:2, :]     # (1, w) f32: packed position within a row (0..k-1)
    poff = const_ref[2:3, :]    # (1, w) f32: parity * pi/2 (0 on cos lanes)
    base = pl.program_id(0) * tile_rows
    n_chunks = tile_rows // chunk_rows

    def chunk(c, carry):
        start = pl.multiple_of(c * chunk_rows, chunk_rows)
        row = base + start + lax.broadcasted_iota(jnp.int32, (chunk_rows, 1), 0)
        i_f = (row * k).astype(jnp.float32) + pos        # exact integer index
        x = i_f * theta            # fl32(i*theta): same rounding as torch.outer
        # mod-2*pi range reduction; poff is folded into the quotient pick so the
        # final cos argument stays within ~[-pi, pi].  (int cast == floor, x>=0)
        q = ((x - poff) * _INV_2PI + 0.5).astype(jnp.int32).astype(jnp.float32)
        r = ((x - q * _P1) - q * _P2) - q * _P3
        o_ref[pl.ds(start, chunk_rows), :] = jnp.cos(r - poff).astype(o_ref.dtype)
        return carry

    lax.fori_loop(0, n_chunks, chunk, 0, unroll=n_chunks <= 8)


@functools.lru_cache(maxsize=None)
def _kernel_f16_supported() -> bool:
    """One-time probe: can Mosaic lower an in-kernel f32->f16 cast + f16 store?"""
    def probe(o_ref):
        o_ref[...] = lax.broadcasted_iota(jnp.float32, o_ref.shape, 1
                                          ).astype(jnp.float16)
    try:
        jax.block_until_ready(
            pl.pallas_call(probe,
                           out_shape=jax.ShapeDtypeStruct((8, 128), jnp.float16))())
        return True
    except Exception as exc:  # noqa: BLE001 -- any compile/run failure => fallback
        warnings.warn(
            "Pallas/Mosaic rejected in-kernel float16 stores "
            f"({type(exc).__name__}: {exc}). Falling back to an f32 slab + XLA "
            "convert, which ~3x the HBM traffic of this store-bound kernel.",
            RuntimeWarning, stacklevel=2)
        return False


def _round_up(x: int, m: int) -> int:
    return ((x + m - 1) // m) * m


def _pick_pack_factor(seq_len: int, dim: int, max_lanes: int) -> int:
    """Positions packed per slab row so width = k*dim is a multiple of 128 lanes
    (lane-dense, unmasked stores) with no divisibility requirement on seq_len."""
    k0 = 128 // math.gcd(dim, 128)
    if k0 * dim > max_lanes:
        return 1          # dim too wide to widen; block == full dim anyway
    k = k0
    # Widen for lane density while enough slab rows remain for >=2 pipelined
    # tiles of 8 sublanes each.
    while (k + k0) * dim <= max_lanes and pl.cdiv(seq_len, k + k0) >= 16:
        k += k0
    return k


def _choose_tiling(rows: int, max_tile_rows: int, target_tiles: int):
    """>=2 (ideally target_tiles) tiles of 8*n rows: overlaps HBM writeback of
    tile s-1 with compute of tile s and feeds both v7x TensorCores."""
    if rows <= 8:
        return rows, 1                         # tiny cache: one full block
    n_tiles = max(2, min(target_tiles, rows // 8), pl.cdiv(rows, max_tile_rows))
    tile_rows = min(max_tile_rows, _round_up(pl.cdiv(rows, n_tiles), 8))
    return tile_rows, pl.cdiv(rows, tile_rows)


def rotary_embedding_cache(seq_len: int, dim: int, *, max_lanes: int = 1024,
                           max_tile_rows: int = 512, target_tiles: int = 8):
    """Equivalent of RotaryEmbedding(dim).forward(seq_len) -> (S, dim//2, 2) f16."""
    assert dim % 2 == 0 and seq_len >= 1
    assert seq_len < (1 << 24), "position index must stay exact in float32"
    half = dim // 2

    theta = _theta_f32(dim)                               # reference-exact bits

    k = _pick_pack_factor(seq_len, dim, max_lanes)
    width = k * dim
    rows = pl.cdiv(seq_len, k)
    padded_positions = rows * k

    # Per-lane constants, built host-side once; their block index never changes
    # so the pipeline fetches them into VMEM a single time.
    lane = np.arange(width)
    e = lane % dim
    const = np.stack(
        [theta[e // 2],
         (lane // dim).astype(np.float32),
         (e % 2).astype(np.float32) * np.float32(math.pi / 2.0)],
        axis=0).astype(np.float32)                        # (3, width)

    tile_rows, n_tiles = _choose_tiling(rows, max_tile_rows, target_tiles)
    chunk_rows = 8 if tile_rows % 8 == 0 else tile_rows

    fused_f16 = _kernel_f16_supported()
    out_dtype = jnp.float16 if fused_f16 else jnp.float32

    kernel = functools.partial(_rotary_slab_kernel, k=k, tile_rows=tile_rows,
                               chunk_rows=chunk_rows)
    slab = pl.pallas_call(
        kernel,
        out_shape=jax.ShapeDtypeStruct((rows, width), out_dtype),
        grid=(n_tiles,),
        in_specs=[pl.BlockSpec((3, width), lambda s: (0, 0))],
        out_specs=pl.BlockSpec((tile_rows, width), lambda s: (s, 0)),
        compiler_params=pltpu.CompilerParams(
            dimension_semantics=("parallel",)),   # shards tiles across v7x TCs
        cost_estimate=pl.CostEstimate(
            flops=14 * rows * width,
            transcendentals=rows * width,
            bytes_accessed=rows * width * int(np.dtype(out_dtype).itemsize)
                           + const.size * 4),
    )(jnp.asarray(const))

    if not fused_f16:
        # TODO(synk): drop once in-kernel f16 stores are supported everywhere;
        # this extra XLA pass re-reads/re-writes the whole cache (warned above).
        slab = slab.astype(jnp.float16)

    # Free, contiguous reshape: (rows, k*dim) row-major == (padded, dim//2, 2).
    cache = slab.reshape(padded_positions, half, 2)
    if padded_positions != seq_len:
        # Only when seq_len % k != 0: drop the < k padded positions.
        # TODO(synk): this slice is one extra XLA copy; still cheaper than the
        # ~4x masked-store penalty of a sub-128-lane slab for ragged seq_len.
        cache = cache[:seq_len]
    return cache
    # TODO(synk): the original module wraps the result in a TensorRT-LLM
    # `constant(...)` graph node; no Pallas equivalent, a jnp array is returned.


def _reference(seq_len: int, dim: int) -> np.ndarray:
    """Plain-numpy reference mirroring the PyTorch module."""
    theta = _theta_f32(dim)
    idx_theta = np.outer(np.arange(seq_len, dtype=np.float32), theta
                         ).astype(np.float32)
    return np.stack([np.cos(idx_theta), np.sin(idx_theta)], axis=-1
                    ).astype(np.float16)


if __name__ == "__main__":
    # RotaryEmbedding has no learned parameters; forward only takes seq_len
    # (dim is a static constructor arg).  PRNGKey kept for convention.
    _ = jax.random.PRNGKey(0)

    # Primary small shape.
    seq_len, dim = 8, 32
    cache = jax.block_until_ready(rotary_embedding_cache(seq_len, dim))
    assert cache.shape == (seq_len, dim // 2, 2), cache.shape
    assert cache.dtype == jnp.float16, cache.dtype
    np.testing.assert_allclose(
        np.asarray(cache, dtype=np.float32),
        _reference(seq_len, dim).astype(np.float32), rtol=2e-3, atol=2e-3)

    # Extra coverage: large phases (mod-2*pi accuracy), ragged seq_len
    # (pad + slice path), partial last grid tile, multi-tile pipelined grid.
    for s, d in ((4096, 64), (333, 64), (37, 32)):
        got = jax.block_until_ready(rotary_embedding_cache(s, d))
        assert got.shape == (s, d // 2, 2) and got.dtype == jnp.float16
        np.testing.assert_allclose(
            np.asarray(got, dtype=np.float32),
            _reference(s, d).astype(np.float32), rtol=2e-3, atol=2e-3)

    print("KERNEL_OK")
</pallas_src>

<mosaic_0001>
module attributes {stable_mosaic.version = 11 : i64} {
  func.func @_rotary_slab_kernel(%arg0: i32, %arg1: memref<3x128xf32, #tpu.memory_space<vmem>>, %arg2: memref<2x128xf32, #tpu.memory_space<vmem>>) attributes {dimension_semantics = [#tpu.dimension_semantics<parallel>], iteration_bounds = array<i64: 1>, scalar_prefetch = 0 : i64, scratch_operands = 0 : i64, tpu.core_type = #tpu.core_type<tc>, window_params = [{pipeline_mode = #tpu.pipeline_mode<synchronous>, transform_indices = @transform_0, window_bounds = array<i64: 3, 128>}, {transform_indices = @transform_1, window_bounds = array<i64: 2, 128>}]} {
    %c0 = arith.constant 0 : index
    %c0_0 = arith.constant 0 : index
    %0 = vector.load %arg1[%c0, %c0_0] : memref<3x128xf32, #tpu.memory_space<vmem>>, vector<1x128xf32>
    %c1 = arith.constant 1 : index
    %c0_1 = arith.constant 0 : index
    %1 = vector.load %arg1[%c1, %c0_1] : memref<3x128xf32, #tpu.memory_space<vmem>>, vector<1x128xf32>
    %c2 = arith.constant 2 : index
    %c0_2 = arith.constant 0 : index
    %2 = vector.load %arg1[%c2, %c0_2] : memref<3x128xf32, #tpu.memory_space<vmem>>, vector<1x128xf32>
    %c2_i32 = arith.constant 2 : i32
    %3 = arith.muli %arg0, %c2_i32 : i32
    %c0_i32 = arith.constant 0 : i32
    %c2_i32_3 = arith.constant 2 : i32
    %4 = arith.muli %c0_i32, %c2_i32_3 : i32
    %5 = tpu.assume_multiple %4, 2 : i32
    %6 = arith.addi %3, %5 : i32
    %7 = tpu.iota {dimensions = array<i32: 0>} : vector<2x1xi32>
    %8 = vector.broadcast %6 : i32 to vector<2x1xi32>
    %9 = arith.addi %8, %7 : vector<2x1xi32>
    %c4_i32 = arith.constant 4 : i32
    %10 = vector.broadcast %c4_i32 : i32 to vector<2x1xi32>
    %11 = arith.muli %9, %10 : vector<2x1xi32>
    %12 = arith.sitofp %11 : vector<2x1xi32> to vector<2x1xf32>
    %13 = vector.broadcast %12 : vector<2x1xf32> to vector<2x128xf32>
    %14 = vector.broadcast %1 : vector<1x128xf32> to vector<2x128xf32>
    %15 = arith.addf %13, %14 : vector<2x128xf32>
    %16 = vector.broadcast %0 : vector<1x128xf32> to vector<2x128xf32>
    %17 = arith.mulf %15, %16 : vector<2x128xf32>
    %18 = vector.broadcast %2 : vector<1x128xf32> to vector<2x128xf32>
    %19 = arith.subf %17, %18 : vector<2x128xf32>
    %cst = arith.constant 0.159154937 : f32
    %20 = vector.broadcast %cst : f32 to vector<2x128xf32>
    %21 = arith.mulf %19, %20 : vector<2x128xf32>
    %cst_4 = arith.constant 5.000000e-01 : f32
    %22 = vector.broadcast %cst_4 : f32 to vector<2x128xf32>
    %23 = arith.addf %21, %22 : vector<2x128xf32>
    %24 = arith.fptosi %23 : vector<2x128xf32> to vector<2x128xi32>
    %25 = arith.sitofp %24 : vector<2x128xi32> to vector<2x128xf32>
    %cst_5 = arith.constant 6.281250e+00 : f32
    %26 = vector.broadcast %cst_5 : f32 to vector<2x128xf32>
    %27 = arith.mulf %25, %26 : vector<2x128xf32>
    %28 = arith.subf %17, %27 : vector<2x128xf32>
    %cst_6 = arith.constant 0.00193530717 : f32
    %29 = vector.broadcast %cst_6 : f32 to vector<2x128xf32>
    %30 = arith.mulf %25, %29 : vector<2x128xf32>
    %31 = arith.subf %28, %30 : vector<2x128xf32>
    %cst_7 = arith.constant 1.02531317E-11 : f32
    %32 = vector.broadcast %cst_7 : f32 to vector<2x128xf32>
    %33 = arith.mulf %25, %32 : vector<2x128xf32>
    %34 = arith.subf %31, %33 : vector<2x128xf32>
    %35 = vector.broadcast %2 : vector<1x128xf32> to vector<2x128xf32>
    %36 = arith.subf %34, %35 : vector<2x128xf32>
    %37 = math.cos %36 : vector<2x128xf32>
    %38 = arith.index_cast %5 : i32 to index
    %c0_8 = arith.constant 0 : index
    %39 = vector.load %arg2[%38, %c0_8] : memref<2x128xf32, #tpu.memory_space<vmem>>, vector<2x128xf32>
    tpu.vector_store %arg2[%38, %c0_8], %37 {strides = array<i32>} : memref<2x128xf32, #tpu.memory_space<vmem>>, vector<2x128xf32>,
    %c1_i32 = arith.constant 1 : i32
    return
  }
  func.func @transform_0(%arg0: i32) -> (i32, i32) {
    %c0_i32 = arith.constant 0 : i32
    %c0_i32_0 = arith.constant 0 : i32
    %c0_i32_1 = arith.constant 0 : i32
    return %c0_i32, %c0_i32_0 : i32, i32
  }
  func.func @transform_1(%arg0: i32) -> (i32, i32) {
    %c0_i32 = arith.constant 0 : i32
    %c0_i32_0 = arith.constant 0 : i32
    return %arg0, %c0_i32 : i32, i32
  }
}

</mosaic_0001>

<llo_original>
// kernel: tpu_custom_call.1
$region0: #{tpu_custom_call.1}
  #allocation0 [shape = 'u32[]', space=smem, size = 0x4, offset = 0x4, fixed_abs, tag = 'smem constant byte address 0x4 - core index']
  #allocation1 [shape = 'u32[144,128]{1,0:T(1,128)}', space=vmem, size = 0x12000, scoped, tag = 'internal scratch']
  %s0 = inlined_call_operand.hbm [shape: f32[3,128], index: 0, kind: input, shape index: {}]
  %s1 = inlined_call_operand.hbm [shape: f32[2,128], index: 1, kind: output, shape index: {}]
  %s2 = sld [smem:[#allocation0]]
  $region18: #{tpu_custom_call.1} parent=0
    _
  %s4 = ssub.s32 1, %s2
  %s5 = scalar_select 0, %s4, %s2
  $region1: #{tpu_custom_call.1} parent=0
    #allocation2 [shape = 'u8[2048]{0}', space=vmem, size = 0x800, scoped, tag = 'input window, operand 0, single buffered']
    #allocation3 [shape = 's32[1]{0}', space=sflag, size = 0x4, scoped, tag = 'scoped memory for tpu_custom_call.1']
    #allocation4 [shape = 's32[1]{0}', space=sflag, size = 0x4, scoped, tag = 'scoped memory for tpu_custom_call.1']
    #allocation5 [shape = 'u8[1024]{0}', space=vmem, size = 0x400, scoped, tag = 'output window, operand 0, single buffered']
    %6 = vsyncpa [#allocation3], 0
    %7 = vsyncpa [#allocation4], 0
    // Predicated region
    $region2: #{tpu_custom_call.1} parent=1 // pred_check
      _
    $region3: #{tpu_custom_call.1} parent=1 // pred_check_branch
      %9 = sbr.rel (0) target = $region5
    $region4: #{tpu_custom_call.1} parent=1 // pred_region
      %s11 = ssub.s32 64, 64
      %12 = vsyncadd [#allocation3], %s11
      %s14 = sshll.u32 [#allocation2], 4
      %s15 = int_to_ptr.vmem [resolvable:$true] %s14
      %17 = dma.hbm_to_vmem [thread:$0]  %s0, 64, %s15, [#allocation3]
    $region5: #{tpu_custom_call.1} parent=1 // pred_fallthru
      _
    // Predicated region
    $region6: #{tpu_custom_call.1} parent=1 // pred_check
      _
    $region7: #{tpu_custom_call.1} parent=1 // pred_check_branch
      %19 = sbr.rel (0) target = $region9
    $region8: #{tpu_custom_call.1} parent=1 // pred_region
      %20 = dma.done [#allocation3], 64
    $region9: #{tpu_custom_call.1} parent=1 // pred_fallthru
      _
    %v21 = vld [vmem:[#allocation2] sm:$0x1]
    %v22 = vld [vmem:[#allocation2 + $0x1] sm:$0x1]
    %v23 = vld [vmem:[#allocation2 + $0x2] sm:$0x1]
    %s24 = smul.u32 0, 2
    %s25 = sadd.s32 %s24, 0
    %v26 = vlaneseq
    %v27 = vshrl.u32 %v26, 7
    %v28 = vstv %s25
    %v29 = vadd.s32 %v28, %v27
    %v30 = vmul.u32 %v29, 4
    %v31 = vcvt.s32.f32 %v30
    %v32 = vlaneseq
    %v33 = vshrl.u32 %v32, 7
    %v34 = vsub.s32 0, %v33
    %v35 = vrot.slane %v22, %v34
    %v36 = vadd.f32 %v31, %v35
    %v37 = vlaneseq
    %v38 = vshrl.u32 %v37, 7
    %v39 = vsub.s32 0, %v38
    %v40 = vrot.slane %v21, %v39
    %v41 = vmul.f32 %v36, %v40
    %v42 = vlaneseq
    %v43 = vshrl.u32 %v42, 7
    %v44 = vsub.s32 0, %v43
    %v45 = vrot.slane %v23, %v44
    %v46 = vsub.f32 %v41, %v45
    %v47 = vmul.f32 %v46, 0.15915494
    %v48 = vadd.f32 %v47, 0.5
    %v49 = vcvt.f32.s32.to.zero.pseudo %v48
    %v50 = vcvt.s32.f32 %v49
    %v51 = vmul.f32 %v50, 6.28125
    %v52 = vsub.f32 %v41, %v51
    %v53 = vmul.f32 %v50, 0.0019353072
    %v54 = vsub.f32 %v52, %v53
    %v55 = vmul.f32 %v50, 1.0253132e-11
    %v56 = vsub.f32 %v54, %v55
    %v57 = vsub.f32 %v56, %v45
    %v58 = vand.u32 2147483647, %v57
    %vm59 = vcmp.le.f32.partialorder %v58, 0.7853982
    %vm60 = vcmp.lt.s32.totalorder %v57, 0
    %v61 = vand.u32 %v57, 2139095040
    %v62 = vshrl.u32 %v61, 23
    %v63 = vsub.s32 %v62, 127
    %v64 = vand.u32 2147483647, %v57
    %v65 = vand.u32 %v64, 8388607
    %v66 = vor.u32 %v65, 8388608
    %v67 = vsub.s32 0, %v66
    %v68 = vadd.s32 %v63, 1
    %vm69 = vcmp.gt.s32.totalorder %v68, 0
    %v70 = vsel %vm69, %v68, 0
    %v71 = vshrl.u32 %v70, 5
    %v72 = vand.u32 %v70, 31
    %v73 = vsub.s32 32, %v72
    %v74 = vshrl.u32 683565275, %v73
    %v75 = vshll.u32 683565275, %v72
    %v76 = vshrl.u32 2475754826, %v73
    %v77 = vor.u32 %v75, %v76
    %v78 = vshll.u32 2475754826, %v72
    %v79 = vshrl.u32 2131351028, %v73
    %v80 = vor.u32 %v78, %v79
    %v81 = vshll.u32 2131351028, %v72
    %v82 = vshrl.u32 2102212464, %v73
    %v83 = vor.u32 %v81, %v82
    %v84 = vshll.u32 2102212464, %v72
    %v85 = vshrl.u32 920167782, %v73
    %v86 = vor.u32 %v84, %v85
    %v87 = vshll.u32 920167782, %v72
    %v88 = vshrl.u32 1326507024, %v73
    %v89 = vor.u32 %v87, %v88
    %vm90 = vcmp.lt.s32.totalorder %v71, 1
    %vm91 = vcmp.lt.s32.totalorder %v71, 2
    %vm92 = vcmp.lt.s32.totalorder %v71, 3
    %vm93 = vcmp.lt.s32.totalorder %v71, 4
    %v94 = vsel %vm90, %v74, %v77
    %v95 = vsel %vm93, %v83, 2102212464
    %v96 = vsel %vm92, %v80, %v95
    %v97 = vsel %vm91, %v94, %v96
    %v98 = vsel %vm90, %v77, %v80
    %v99 = vsel %vm93, %v86, 920167782
    %v100 = vsel %vm92, %v83, %v99
    %v101 = vsel %vm91, %v98, %v100
    %v102 = vsel %vm90, %v80, %v83
    %v103 = vsel %vm93, %v89, 1326507024
    %v104 = vsel %vm92, %v86, %v103
    %v105 = vsel %vm91, %v102, %v104
    %v106 = vshll.u32 %v66, 8
    %v107 = vmul.u32.u64.compose %v106, %v105
    %v108 = vextract.low.u32 %v107
    %v109 = vextract.high.u32 %v107
    %v110 = vmul.u32.u64.compose %v106, %v101
    %v111 = vextract.low.u32 %v110
    %v112 = vextract.high.u32 %v110
    %v113 = vmul.u32 %v106, %v97
    %v114 = vadd.s32 %v109, %v111
    %vm115 = vc.u32 %v109, %v111
    %v116 = vadd.s32 %v112, 1
    %v117 = vsel %vm115, %v116, %v112
    %v118 = vadd.s32 %v113, %v117
    %v119 = vadd.s32 %v118, 536870912
    %v120 = vshrl.u32 %v119, 30
    %v121 = vshll.u32 %v120, 30
    %v122 = vsub.s32 %v118, %v121
    %vm123 = vcmp.lt.s32.totalorder %v122, 0
    %v124 = vsub.s32 0, %v122
    %v125 = vsel %vm123, %v124, %v122
    %v126 = vclz %v125
    %v127 = vsub.s32 %v126, 2
    %vm128 = vcmp.gt.s32.totalorder 0, %v127
    %v129 = vsel %vm128, 0, %v127
    %v130 = vsub.s32 32, %v129
    %v131 = vshll.u32 %v122, %v129
    %v132 = vshrl.u32 %v114, %v130
    %v133 = vor.u32 %v131, %v132
    %v134 = vsub.s32 4294967266, %v129
    %v135 = vadd.s32 %v134, 127
    %v136 = vshll.u32 %v135, 23
    %v137 = vor.u32 4788187, %v136
    %v138 = vand.u32 2147483647, %v137
    %v140 = vcvt.s32.f32 %v133
    %v141 = vmul.f32 %v140, %v138
    %v142 = vxor.u32 %v141, 2147483648
    %v143 = vsel %vm60, %v142, %v141
    %v144 = vsub.s32 4, %v120
    %v145 = vsel %vm60, %v144, %v120
    %v146 = vsel %vm59, %v57, %v143
    %v147 = vsel %vm59, 0, %v145
    %v148 = vcosq.f32.pop %v146
    %v149 = vsinq.f32.pop %v146
    %vm150 = vweird.f32 %v57
    %v151 = vand.u32 %v147, 3
    %vm152 = vcmp.lt.s32.totalorder %v151, 2
    %vm153 = vcmp.eq.s32.totalorder %v151, 0
    %v154 = vxor.u32 %v149, 2147483648
    %v155 = vsel %vm153, %v148, %v154
    %vm156 = vcmp.eq.s32.totalorder %v151, 2
    %v157 = vxor.u32 %v148, 2147483648
    %v158 = vsel %vm156, %v157, %v149
    %v159 = vsel %vm152, %v155, %v158
    %v160 = vsel %vm150, nan, %v159
    %161 = vst [vmem:[#allocation5] sm:$0x3] %v160
    // Predicated region
    $region10: #{tpu_custom_call.1} parent=1 // pred_check
      _
    $region11: #{tpu_custom_call.1} parent=1 // pred_check_branch
      %163 = sbr.rel (0) target = $region13
    $region12: #{tpu_custom_call.1} parent=1 // pred_region
      %s165 = ssub.s32 32, 32
      %166 = vsyncadd [#allocation4], %s165
      %s168 = sshll.u32 [#allocation5], 4
      %s169 = int_to_ptr.vmem [resolvable:$true] %s168
      %171 = dma.vmem_to_hbm [thread:$0]  %s169, 32, %s1, [#allocation4]
    $region13: #{tpu_custom_call.1} parent=1 // pred_fallthru
      _
    // Predicated region
    $region14: #{tpu_custom_call.1} parent=1 // pred_check
      _
    $region15: #{tpu_custom_call.1} parent=1 // pred_check_branch
      %173 = sbr.rel (0) target = $region17
    $region16: #{tpu_custom_call.1} parent=1 // pred_region
      %174 = dma.done [#allocation4], 32
    $region17: #{tpu_custom_call.1} parent=1 // pred_fallthru
      _
    %175 = vsyncpa [#allocation3], 1
    %176 = vsyncpa [#allocation4], 1

</llo_original>
